<compile_context>
chip_gen: v7x
topology: tpu7x:2x2x1
jax: 0.10.0
libtpu: 0.0.40
codegen_flags: <defaults>
</compile_context>

<pallas_src>
import functools

import jax
import jax.numpy as jnp
import numpy as np
from jax import lax
from jax.experimental import pallas as pl
from jax.experimental.pallas import tpu as pltpu


def decoder_seq_kernel(xa_ref, h0_ref, w_ref, out_ref, hN_ref, *, H, O, F, C, T, rows):
    """T decoder steps fused into one kernel invocation.

    xa_ref : (T, 1, O+H) f32   per-step [input_t | attn_t] rows
    h0_ref : (1, H)      f32   initial hidden state (aliased with hN_ref)
    w_ref  : (R, C)      bf16  packed weight slab (transposed weight bands + bias rows)
    out_ref: (T, 1, C)   f32   lane-dense per-step log-softmax rows (first O lanes real)
    hN_ref : (1, H)      f32   final hidden state
    """
    f32 = jnp.float32
    bf16 = jnp.bfloat16
    r_wc, r_wih, r_whh, r_wh, r_wo, r_b = rows

    # Hoisted, tile-aligned loads: bf16 weight bands stay resident across all T steps,
    # bias rows are loaded once and cast to f32.
    wc = w_ref[r_wc:r_wc + O + H, :]          # (O+H, C)  attn_combine^T
    wih = w_ref[r_wih:r_wih + O, :]           # (O,   C)  W_ih^T   (r|z|n on lanes)
    whh = w_ref[r_whh:r_whh + H, :]           # (H,   C)  W_hh^T
    wh = w_ref[r_wh:r_wh + H, :]              # (H,   C)  hidden Linear^T
    wo = w_ref[r_wo:r_wo + F, :]              # (F,   C)  out Linear^T
    bias = w_ref[r_b:r_b + 16, :].astype(f32)  # 16-row aligned bias band
    bc = bias[0:1, :]
    bih = bias[1:2, :]
    bhh = bias[2:3, :]
    bh = bias[3:4, :]
    bo = bias[4:5, :]

    lane = lax.broadcasted_iota(jnp.int32, (1, C), 1)
    neg_big = jnp.float32(-1e30)

    # NOTE: h0_ref and hN_ref may share a buffer (input_output_aliases); h0 is read
    # exactly once here, before any write to hN_ref, so the alias is safe.
    h0 = h0_ref[...]                          # (1, H) f32

    def step(t, h):
        xa = xa_ref[t]                                                      # (1, O+H)
        # attn_combine(cat(input, attn)) + ReLU — full-lane-band MXU push.
        comb = jnp.dot(xa.astype(bf16), wc, preferred_element_type=f32) + bc
        comb = jnp.maximum(comb, 0.0)                                       # (1, C)
        # GRU cell: two fused gate matmuls give all six gate products.
        gi = jnp.dot(comb[:, :O].astype(bf16), wih, preferred_element_type=f32) + bih
        gh = jnp.dot(h.astype(bf16), whh, preferred_element_type=f32) + bhh
        s = jax.nn.sigmoid(gi + gh)            # one EUP pass covers both r and z lanes
        r = s[:, 0:H]
        z = s[:, H:2 * H]
        n = jnp.tanh(gi[:, 2 * H:3 * H] + r * gh[:, 2 * H:3 * H])
        h_new = (1.0 - z) * n + z * h                                       # (1, H) f32
        # hidden Linear + ReLU, then out Linear.
        hid = jnp.maximum(
            jnp.dot(h_new.astype(bf16), wh, preferred_element_type=f32) + bh, 0.0)
        logits = jnp.dot(hid[:, :F].astype(bf16), wo, preferred_element_type=f32) + bo
        # LogSoftmax(dim=1) over the O real lanes (pad lanes masked out of max/sum).
        lm = jnp.where(lane < O, logits, neg_big)
        m = jnp.max(lm, axis=1, keepdims=True)
        lse = m + jnp.log(jnp.sum(jnp.exp(lm - m), axis=1, keepdims=True))
        out_ref[t] = lm - lse                        # lane-dense (1, C) unmasked store
        return h_new

    h_final = lax.fori_loop(0, T, step, h0, unroll=(T <= 16))
    hN_ref[...] = h_final


def pack_params(params, weight_dtype=jnp.bfloat16):
    """One-time host-side packing: transpose weights into a single lane-dense slab
    (16-row-aligned bands, biases in the bottom band), stored in `weight_dtype`."""
    H = int(params["W_hh"].shape[1])
    O = int(params["W_ih"].shape[1])
    F = int(params["W_hidden"].shape[0])      # 128 in the module

    padr = lambda n: -(-n // 16) * 16          # 16-row bands: aligned for bf16 and f32
    C = -(-max(O, 3 * H, F) // 128) * 128      # lane width of the slab (>= 128)

    r_wc = 0
    r_wih = r_wc + padr(O + H)
    r_whh = r_wih + padr(O)
    r_wh = r_whh + padr(H)
    r_wo = r_wh + padr(H)
    r_b = r_wo + padr(F)
    R = r_b + 16

    W = np.zeros((R, C), np.float32)
    W[r_wc:r_wc + O + H, 0:O] = np.asarray(params["W_combine"]).T
    W[r_wih:r_wih + O, 0:3 * H] = np.asarray(params["W_ih"]).T
    W[r_whh:r_whh + H, 0:3 * H] = np.asarray(params["W_hh"]).T
    W[r_wh:r_wh + H, 0:F] = np.asarray(params["W_hidden"]).T
    W[r_wo:r_wo + F, 0:O] = np.asarray(params["W_out"]).T
    W[r_b + 0, 0:O] = np.asarray(params["b_combine"])
    W[r_b + 1, 0:3 * H] = np.asarray(params["b_ih"])
    W[r_b + 2, 0:3 * H] = np.asarray(params["b_hh"])
    W[r_b + 3, 0:F] = np.asarray(params["b_hidden"])
    W[r_b + 4, 0:O] = np.asarray(params["b_out"])

    return {"W": jnp.asarray(W, weight_dtype),
            "H": H, "O": O, "F": F, "C": C,
            "rows": (r_wc, r_wih, r_whh, r_wh, r_wo, r_b)}


def _decoder_call(packed, xa_seq, h0):
    """Run T fused decoder steps in one pallas_call."""
    H, O, F, C = packed["H"], packed["O"], packed["F"], packed["C"]
    T = xa_seq.shape[0]
    kernel = functools.partial(decoder_seq_kernel, H=H, O=O, F=F, C=C, T=T,
                               rows=packed["rows"])
    vmem = pl.BlockSpec(memory_space=pltpu.MemorySpace.VMEM)
    logp, h_final = pl.pallas_call(
        kernel,
        out_shape=(
            jax.ShapeDtypeStruct((T, 1, C), jnp.float32),   # lane-dense log-prob rows
            jax.ShapeDtypeStruct((1, H), jnp.float32),      # final hidden
        ),
        in_specs=[vmem, vmem, vmem],
        out_specs=(vmem, vmem),
        input_output_aliases={1: 1},    # hidden carry: h0 buffer reused for h_final
    )(xa_seq, h0, packed["W"])
    return logp, h_final


def simple_attn_decoder_forward(packed, inp, hidden, attn):
    """Single step; matches PyTorch forward(input(1,1,O), hidden(1,1,H), attn(H,))."""
    H, O = packed["H"], packed["O"]
    x = inp.reshape(1, O).astype(jnp.float32)
    a = attn.reshape(1, H).astype(jnp.float32)
    h = hidden.reshape(1, H).astype(jnp.float32)
    xa = jnp.concatenate([x, a], axis=1).reshape(1, 1, O + H)  # torch.cat(input, attn)
    logp, h_final = _decoder_call(packed, xa, h)
    return logp[0, :, :O], h_final.reshape(1, 1, H)            # (1,O), (1,1,H)


def simple_attn_decoder_decode(packed, inp_seq, hidden0, attn_seq):
    """T fused decoder steps in ONE pallas_call (weights resident, h carried in-kernel);
    step t is exactly the module's forward(inp_seq[t], h_t, attn_seq[t])."""
    H, O = packed["H"], packed["O"]
    T = inp_seq.shape[0]
    xa = jnp.concatenate([inp_seq.reshape(T, O), attn_seq.reshape(T, H)],
                         axis=1).astype(jnp.float32).reshape(T, 1, O + H)
    h0 = hidden0.reshape(1, H).astype(jnp.float32)
    logp, h_final = _decoder_call(packed, xa, h0)
    return logp[:, 0, :O], h_final.reshape(1, 1, H)            # (T,O), (1,1,H)


def _reference_forward(params, inp, hidden, attn):
    """Plain-JAX f32 reference mirroring the PyTorch forward, for sanity checks."""
    H = params["W_hh"].shape[1]
    O = params["W_ih"].shape[1]
    x = inp.reshape(1, O)
    h = hidden.reshape(1, H)
    a = attn.reshape(1, H)
    cat = jnp.concatenate([x, a], axis=1)
    combined = jax.nn.relu(cat @ params["W_combine"].T + params["b_combine"])
    gi = combined @ params["W_ih"].T + params["b_ih"]
    gh = h @ params["W_hh"].T + params["b_hh"]
    r = jax.nn.sigmoid(gi[:, :H] + gh[:, :H])
    z = jax.nn.sigmoid(gi[:, H:2 * H] + gh[:, H:2 * H])
    n = jnp.tanh(gi[:, 2 * H:] + r * gh[:, 2 * H:])
    h_new = (1.0 - z) * n + z * h
    hid = jax.nn.relu(h_new @ params["W_hidden"].T + params["b_hidden"])
    logits = hid @ params["W_out"].T + params["b_out"]
    out = jax.nn.log_softmax(logits, axis=1)
    return out, h_new.reshape(1, 1, H)


def init_params(key, hidden_size, output_size):
    H, O = hidden_size, output_size

    def uniform(key, shape, fan_in):
        bound = 1.0 / np.sqrt(fan_in)
        return jax.random.uniform(key, shape, jnp.float32, -bound, bound)

    ks = jax.random.split(key, 10)
    return {
        "W_combine": uniform(ks[0], (O, O + H), O + H),
        "b_combine": uniform(ks[1], (O,), O + H),
        "W_ih": uniform(ks[2], (3 * H, O), H),
        "W_hh": uniform(ks[3], (3 * H, H), H),
        "b_ih": uniform(ks[4], (3 * H,), H),
        "b_hh": uniform(ks[5], (3 * H,), H),
        "W_hidden": uniform(ks[6], (128, H), H),
        "b_hidden": uniform(ks[7], (128,), H),
        "W_out": uniform(ks[8], (O, 128), 128),
        "b_out": uniform(ks[9], (O,), 128),
    }


if __name__ == "__main__":
    hidden_size, output_size, T = 32, 16, 8

    key = jax.random.PRNGKey(0)
    kp, ki, kh, ka, ks, kt = jax.random.split(key, 6)
    params = init_params(kp, hidden_size, output_size)
    packed = pack_params(params)          # one-time packing (transpose + bf16 cast)

    # ---- single step: module-equivalent forward ------------------------------------
    inp = jax.random.normal(ki, (1, 1, output_size), jnp.float32)      # (seq=1,batch=1,O)
    hidden = jax.random.normal(kh, (1, 1, hidden_size), jnp.float32)   # (layers=1,1,H)
    attn = jax.random.normal(ka, (hidden_size,), jnp.float32)          # (H,)

    fwd = jax.jit(functools.partial(simple_attn_decoder_forward, packed))
    out, h_new = fwd(inp, hidden, attn)
    jax.block_until_ready((out, h_new))

    ref_out, ref_h = _reference_forward(params, inp, hidden, attn)
    # bf16 weight quantization -> loosened tolerance vs. the f32 reference.
    np.testing.assert_allclose(np.asarray(out), np.asarray(ref_out), rtol=5e-2, atol=5e-2)
    np.testing.assert_allclose(np.asarray(h_new), np.asarray(ref_h), rtol=5e-2, atol=5e-2)
    assert out.shape == (1, output_size)
    assert h_new.shape == (1, 1, hidden_size)

    # ---- T fused steps: the structural perf win (one pallas_call, weights resident) --
    inp_seq = jax.random.normal(ks, (T, output_size), jnp.float32)
    attn_seq = jax.random.normal(kt, (T, hidden_size), jnp.float32)

    dec = jax.jit(functools.partial(simple_attn_decoder_decode, packed))
    logp_seq, h_T = dec(inp_seq, hidden, attn_seq)
    jax.block_until_ready((logp_seq, h_T))

    h_ref = hidden
    ref_rows = []
    for t in range(T):
        o_t, h_ref = _reference_forward(
            params, inp_seq[t].reshape(1, 1, output_size), h_ref, attn_seq[t])
        ref_rows.append(o_t)
    ref_logp = jnp.concatenate(ref_rows, axis=0)
    np.testing.assert_allclose(np.asarray(logp_seq), np.asarray(ref_logp),
                               rtol=5e-2, atol=5e-2)
    np.testing.assert_allclose(np.asarray(h_T), np.asarray(h_ref), rtol=5e-2, atol=5e-2)
    assert logp_seq.shape == (T, output_size)
    assert h_T.shape == (1, 1, hidden_size)

    print("KERNEL_OK")
</pallas_src>

<mosaic_0001>
module attributes {stable_mosaic.version = 11 : i64} {
  func.func @decoder_seq_kernel(%arg0: memref<1x1x48xf32, #tpu.memory_space<vmem>>, %arg1: memref<1x32xf32, #tpu.memory_space<vmem>>, %arg2: memref<272x128xbf16, #tpu.memory_space<vmem>>, %arg3: memref<1x1x128xf32, #tpu.memory_space<vmem>>, %arg4: memref<1x32xf32, #tpu.memory_space<vmem>>) attributes {dimension_semantics = [], scalar_prefetch = 0 : i64, scratch_operands = 0 : i64, tpu.core_type = #tpu.core_type<tc>} {
    %c0 = arith.constant 0 : index
    %c0_0 = arith.constant 0 : index
    %0 = vector.load %arg2[%c0, %c0_0] : memref<272x128xbf16, #tpu.memory_space<vmem>>, vector<48x128xbf16>
    %c48 = arith.constant 48 : index
    %c0_1 = arith.constant 0 : index
    %1 = vector.load %arg2[%c48, %c0_1] : memref<272x128xbf16, #tpu.memory_space<vmem>>, vector<16x128xbf16>
    %c64 = arith.constant 64 : index
    %c0_2 = arith.constant 0 : index
    %2 = vector.load %arg2[%c64, %c0_2] : memref<272x128xbf16, #tpu.memory_space<vmem>>, vector<32x128xbf16>
    %c96 = arith.constant 96 : index
    %c0_3 = arith.constant 0 : index
    %3 = vector.load %arg2[%c96, %c0_3] : memref<272x128xbf16, #tpu.memory_space<vmem>>, vector<32x128xbf16>
    %c128 = arith.constant 128 : index
    %c0_4 = arith.constant 0 : index
    %4 = vector.load %arg2[%c128, %c0_4] : memref<272x128xbf16, #tpu.memory_space<vmem>>, vector<128x128xbf16>
    %c256 = arith.constant 256 : index
    %c0_5 = arith.constant 0 : index
    %5 = vector.load %arg2[%c256, %c0_5] : memref<272x128xbf16, #tpu.memory_space<vmem>>, vector<16x128xbf16>
    %6 = arith.extf %5 : vector<16x128xbf16> to vector<16x128xf32>
    %7 = vector.extract_strided_slice %6 {offsets = [0, 0], sizes = [1, 128], strides = [1, 1]} : vector<16x128xf32> to vector<1x128xf32>
    %8 = vector.extract_strided_slice %6 {offsets = [1, 0], sizes = [1, 128], strides = [1, 1]} : vector<16x128xf32> to vector<1x128xf32>
    %9 = vector.extract_strided_slice %6 {offsets = [2, 0], sizes = [1, 128], strides = [1, 1]} : vector<16x128xf32> to vector<1x128xf32>
    %10 = vector.extract_strided_slice %6 {offsets = [3, 0], sizes = [1, 128], strides = [1, 1]} : vector<16x128xf32> to vector<1x128xf32>
    %11 = vector.extract_strided_slice %6 {offsets = [4, 0], sizes = [1, 128], strides = [1, 1]} : vector<16x128xf32> to vector<1x128xf32>
    %12 = tpu.iota {dimensions = array<i32: 1>} : vector<1x128xi32>
    %c0_6 = arith.constant 0 : index
    %c0_7 = arith.constant 0 : index
    %13 = vector.load %arg1[%c0_6, %c0_7] : memref<1x32xf32, #tpu.memory_space<vmem>>, vector<1x32xf32>
    %cst = arith.constant -1.000000e+30 : f32
    %c0_i32 = arith.constant 0 : i32
    %14 = arith.index_cast %c0_i32 : i32 to index
    %c0_8 = arith.constant 0 : index
    %c0_9 = arith.constant 0 : index
    %15 = vector.load %arg0[%14, %c0_8, %c0_9] : memref<1x1x48xf32, #tpu.memory_space<vmem>>, vector<1x1x48xf32>
    %16 = vector.shape_cast %15 : vector<1x1x48xf32> to vector<1x48xf32>
    %17 = arith.truncf %16 : vector<1x48xf32> to vector<1x48xbf16>
    %cst_10 = arith.constant dense<0.000000e+00> : vector<1x128xf32>
    %18 = tpu.matmul %17, %0, %cst_10 {dimension_numbers = #tpu.dot_dimension_numbers<[1], [0], [0], [1], [0, 0, 1, 1], [], []>} : vector<1x48xbf16>, vector<48x128xbf16>, vector<1x128xf32> -> vector<1x128xf32>
    %19 = arith.addf %18, %7 : vector<1x128xf32>
    %cst_11 = arith.constant 0.000000e+00 : f32
    %20 = vector.broadcast %cst_11 : f32 to vector<1x128xf32>
    %21 = arith.maximumf %19, %20 : vector<1x128xf32>
    %22 = vector.extract_strided_slice %21 {offsets = [0, 0], sizes = [1, 16], strides = [1, 1]} : vector<1x128xf32> to vector<1x16xf32>
    %23 = arith.truncf %22 : vector<1x16xf32> to vector<1x16xbf16>
    %cst_12 = arith.constant dense<0.000000e+00> : vector<1x128xf32>
    %24 = tpu.matmul %23, %1, %cst_12 {dimension_numbers = #tpu.dot_dimension_numbers<[1], [0], [0], [1], [0, 0, 1, 1], [], []>} : vector<1x16xbf16>, vector<16x128xbf16>, vector<1x128xf32> -> vector<1x128xf32>
    %25 = arith.addf %24, %8 : vector<1x128xf32>
    %26 = arith.truncf %13 : vector<1x32xf32> to vector<1x32xbf16>
    %cst_13 = arith.constant dense<0.000000e+00> : vector<1x128xf32>
    %27 = tpu.matmul %26, %2, %cst_13 {dimension_numbers = #tpu.dot_dimension_numbers<[1], [0], [0], [1], [0, 0, 1, 1], [], []>} : vector<1x32xbf16>, vector<32x128xbf16>, vector<1x128xf32> -> vector<1x128xf32>
    %28 = arith.addf %27, %9 : vector<1x128xf32>
    %29 = arith.addf %25, %28 : vector<1x128xf32>
    %30 = arith.negf %29 : vector<1x128xf32>
    %31 = math.exp %30 : vector<1x128xf32>
    %cst_14 = arith.constant 1.000000e+00 : f32
    %32 = vector.broadcast %cst_14 : f32 to vector<1x128xf32>
    %33 = arith.addf %32, %31 : vector<1x128xf32>
    %34 = arith.divf %32, %33 : vector<1x128xf32>
    %35 = vector.extract_strided_slice %34 {offsets = [0, 0], sizes = [1, 32], strides = [1, 1]} : vector<1x128xf32> to vector<1x32xf32>
    %36 = vector.extract_strided_slice %34 {offsets = [0, 32], sizes = [1, 32], strides = [1, 1]} : vector<1x128xf32> to vector<1x32xf32>
    %37 = vector.extract_strided_slice %25 {offsets = [0, 64], sizes = [1, 32], strides = [1, 1]} : vector<1x128xf32> to vector<1x32xf32>
    %38 = vector.extract_strided_slice %28 {offsets = [0, 64], sizes = [1, 32], strides = [1, 1]} : vector<1x128xf32> to vector<1x32xf32>
    %39 = arith.mulf %35, %38 : vector<1x32xf32>
    %40 = arith.addf %37, %39 : vector<1x32xf32>
    %41 = math.tanh %40 : vector<1x32xf32>
    %cst_15 = arith.constant 1.000000e+00 : f32
    %42 = vector.broadcast %cst_15 : f32 to vector<1x32xf32>
    %43 = arith.subf %42, %36 : vector<1x32xf32>
    %44 = arith.mulf %43, %41 : vector<1x32xf32>
    %45 = arith.mulf %36, %13 : vector<1x32xf32>
    %46 = arith.addf %44, %45 : vector<1x32xf32>
    %47 = arith.truncf %46 : vector<1x32xf32> to vector<1x32xbf16>
    %cst_16 = arith.constant dense<0.000000e+00> : vector<1x128xf32>
    %48 = tpu.matmul %47, %3, %cst_16 {dimension_numbers = #tpu.dot_dimension_numbers<[1], [0], [0], [1], [0, 0, 1, 1], [], []>} : vector<1x32xbf16>, vector<32x128xbf16>, vector<1x128xf32> -> vector<1x128xf32>
    %49 = arith.addf %48, %10 : vector<1x128xf32>
    %cst_17 = arith.constant 0.000000e+00 : f32
    %50 = vector.broadcast %cst_17 : f32 to vector<1x128xf32>
    %51 = arith.maximumf %49, %50 : vector<1x128xf32>
    %52 = arith.truncf %51 : vector<1x128xf32> to vector<1x128xbf16>
    %cst_18 = arith.constant dense<0.000000e+00> : vector<1x128xf32>
    %53 = tpu.matmul %52, %4, %cst_18 {dimension_numbers = #tpu.dot_dimension_numbers<[1], [0], [0], [1], [0, 0, 1, 1], [], []>} : vector<1x128xbf16>, vector<128x128xbf16>, vector<1x128xf32> -> vector<1x128xf32>
    %54 = arith.addf %53, %11 : vector<1x128xf32>
    %c16_i32 = arith.constant 16 : i32
    %55 = vector.broadcast %c16_i32 : i32 to vector<1x128xi32>
    %56 = arith.cmpi slt, %12, %55 : vector<1x128xi32>
    %57 = vector.broadcast %cst : f32 to vector<1x128xf32>
    %58 = arith.select %56, %54, %57 : vector<1x128xi1>, vector<1x128xf32>
    %cst_19 = arith.constant dense<0xFF800000> : vector<1xf32>
    %59 = vector.multi_reduction <maximumf>, %58, %cst_19 [1] : vector<1x128xf32> to vector<1xf32>
    %60 = vector.shape_cast %59 : vector<1xf32> to vector<1x1xf32>
    %61 = vector.broadcast %60 : vector<1x1xf32> to vector<1x128xf32>
    %62 = arith.subf %58, %61 : vector<1x128xf32>
    %63 = math.exp %62 : vector<1x128xf32>
    %cst_20 = arith.constant dense<0.000000e+00> : vector<1xf32>
    %64 = vector.multi_reduction <add>, %63, %cst_20 [1] : vector<1x128xf32> to vector<1xf32>
    %65 = vector.shape_cast %64 : vector<1xf32> to vector<1x1xf32>
    %66 = math.log %65 : vector<1x1xf32>
    %67 = arith.addf %60, %66 : vector<1x1xf32>
    %68 = vector.broadcast %67 : vector<1x1xf32> to vector<1x128xf32>
    %69 = arith.subf %58, %68 : vector<1x128xf32>
    %70 = arith.index_cast %c0_i32 : i32 to index
    %c0_21 = arith.constant 0 : index
    %c0_22 = arith.constant 0 : index
    %71 = vector.load %arg3[%70, %c0_21, %c0_22] : memref<1x1x128xf32, #tpu.memory_space<vmem>>, vector<1x1x128xf32>
    %72 = vector.shape_cast %71 : vector<1x1x128xf32> to vector<1x128xf32>
    %73 = vector.shape_cast %69 : vector<1x128xf32> to vector<1x1x128xf32>
    tpu.vector_store %arg3[%70, %c0_21, %c0_22], %73 {strides = array<i32>} : memref<1x1x128xf32, #tpu.memory_space<vmem>>, vector<1x1x128xf32>,
    %c1_i32 = arith.constant 1 : i32
    %c0_23 = arith.constant 0 : index
    %c0_24 = arith.constant 0 : index
    %74 = vector.load %arg4[%c0_23, %c0_24] : memref<1x32xf32, #tpu.memory_space<vmem>>, vector<1x32xf32>
    tpu.vector_store %arg4[%c0_23, %c0_24], %46 {strides = array<i32>} : memref<1x32xf32, #tpu.memory_space<vmem>>, vector<1x32xf32>,
    return
  }
}

</mosaic_0001>

<llo_original>
// kernel: simple_attn_decoder_forward.1
$region0: #{simple_attn_decoder_forward.1}
  #allocation0 [shape = 'u32[]', space=smem, size = 0x4, offset = 0x4, fixed_abs, tag = 'smem constant byte address 0x4 - core index']
  #allocation1 [shape = 'u32[144,128]{1,0:T(1,128)}', space=vmem, size = 0x12000, scoped, tag = 'internal scratch']
  %s0 = inlined_call_operand.vmem [shape: f32[1,1,48], index: 0, kind: input, shape index: {}]
  %s1 = inlined_call_operand.vmem [shape: f32[1,32], index: 1, kind: input, shape index: {}, may-alias: {1,4}]
  %s2 = inlined_call_operand.hbm [shape: bf16[272,128], index: 2, kind: input, shape index: {}]
  %s3 = inlined_call_operand.vmem [shape: f32[1,1,128], index: 3, kind: output, shape index: {0}]
  %s4 = inlined_call_operand.vmem [shape: f32[1,32], index: 4, kind: output, shape index: {1}, may-alias: {1,4}]
  %5 = xla_tuple %s3, %s4
  %s6 = sld [smem:[#allocation0]]
  $region34: #{simple_attn_decoder_forward.1} parent=0
    _
  %s8 = ssub.s32 1, %s6
  %s9 = scalar_select 0, %s8, %s6
  $region1: #{simple_attn_decoder_forward.1} parent=0
    #allocation2 [shape = 'u8[69632]{0}', space=vmem, size = 0x11000, scoped, tag = 'input window, operand 2, single buffered']
    #allocation3 [shape = 's32[1]{0}', space=sflag, size = 0x4, scoped, tag = 'scoped memory for simple_attn_decoder_forward.1']
    %10 = vsyncpa [#allocation3], 0
    // Predicated region
    $region2: #{simple_attn_decoder_forward.1} parent=1 // pred_check
      _
    $region3: #{simple_attn_decoder_forward.1} parent=1 // pred_check_branch
      %12 = sbr.rel (0) target = $region5
    $region4: #{simple_attn_decoder_forward.1} parent=1 // pred_region
      _
    $region5: #{simple_attn_decoder_forward.1} parent=1 // pred_fallthru
      _
    // Predicated region
    $region6: #{simple_attn_decoder_forward.1} parent=1 // pred_check
      _
    $region7: #{simple_attn_decoder_forward.1} parent=1 // pred_check_branch
      %14 = sbr.rel (0) target = $region9
    $region8: #{simple_attn_decoder_forward.1} parent=1 // pred_region
      _
    $region9: #{simple_attn_decoder_forward.1} parent=1 // pred_fallthru
      _
    // Predicated region
    $region10: #{simple_attn_decoder_forward.1} parent=1 // pred_check
      _
    $region11: #{simple_attn_decoder_forward.1} parent=1 // pred_check_branch
      %16 = sbr.rel (0) target = $region13
    $region12: #{simple_attn_decoder_forward.1} parent=1 // pred_region
      %s18 = ssub.s32 2176, 2176
      %19 = vsyncadd [#allocation3], %s18
      %s20 = sshll.u32 [#allocation2], 4
      %s21 = int_to_ptr.vmem [resolvable:$true] %s20
      %26 = dma.hbm_to_vmem [thread:$0]  %s2, 2176, %s21, [#allocation3], 64, 64, 4
    $region13: #{simple_attn_decoder_forward.1} parent=1 // pred_fallthru
      _
    // Predicated region
    $region14: #{simple_attn_decoder_forward.1} parent=1 // pred_check
      _
    $region15: #{simple_attn_decoder_forward.1} parent=1 // pred_check_branch
      %28 = sbr.rel (0) target = $region17
    $region16: #{simple_attn_decoder_forward.1} parent=1 // pred_region
      %29 = dma.done [#allocation3], 2176
    $region17: #{simple_attn_decoder_forward.1} parent=1 // pred_fallthru
      _
    %v31 = vld [vmem:[#allocation2] sm:$0xf]
    %v32 = vld [vmem:[#allocation2 + $0x4] sm:$0xf]
    %v33 = vld [vmem:[#allocation2 + $0x8] sm:$0xf]
    %v34 = vld [vmem:[#allocation2 + $0xc] sm:$0xf]
    %v35 = vld [vmem:[#allocation2 + $0x10] sm:$0xf]
    %v36 = vld [vmem:[#allocation2 + $0x14] sm:$0xf]
    %v37 = vld [vmem:[#allocation2 + $0x18] sm:$0xf]
    %v38 = vld [vmem:[#allocation2 + $0x1c] sm:$0xf]
    %v39 = vld [vmem:[#allocation2 + $0x20] sm:$0xf]
    %v40 = vld [vmem:[#allocation2 + $0x24] sm:$0xf]
    %v41 = vld [vmem:[#allocation2 + $0x28] sm:$0xf]
    %v42 = vld [vmem:[#allocation2 + $0x2c] sm:$0xf]
    %v43 = vld [vmem:[#allocation2 + $0x30] sm:$0xf]
    %v44 = vld [vmem:[#allocation2 + $0x34] sm:$0xf]
    %v45 = vld [vmem:[#allocation2 + $0x38] sm:$0xf]
    %v46 = vld [vmem:[#allocation2 + $0x3c] sm:$0xf]
    %v47 = vld [vmem:[#allocation2 + $0x40] sm:$0xf]
    %v48 = vld [vmem:[#allocation2 + $0x44] sm:$0xf]
    %v49 = vld [vmem:[#allocation2 + $0x48] sm:$0xf]
    %v50 = vld [vmem:[#allocation2 + $0x4c] sm:$0xf]
    %v51 = vld [vmem:[#allocation2 + $0x50] sm:$0xf]
    %v52 = vld [vmem:[#allocation2 + $0x54] sm:$0xf]
    %v53 = vld [vmem:[#allocation2 + $0x58] sm:$0xf]
    %v54 = vld [vmem:[#allocation2 + $0x5c] sm:$0xf]
    %v55 = vld [vmem:[#allocation2 + $0x60] sm:$0xf]
    %v56 = vld [vmem:[#allocation2 + $0x64] sm:$0xf]
    %v57 = vld [vmem:[#allocation2 + $0x68] sm:$0xf]
    %v58 = vld [vmem:[#allocation2 + $0x6c] sm:$0xf]
    %v59 = vld [vmem:[#allocation2 + $0x70] sm:$0xf]
    %v60 = vld [vmem:[#allocation2 + $0x74] sm:$0xf]
    %v61 = vld [vmem:[#allocation2 + $0x78] sm:$0xf]
    %v62 = vld [vmem:[#allocation2 + $0x7c] sm:$0xf]
    %v63 = vld [vmem:[#allocation2 + $0x80] sm:$0xf]
    %v64 = vunpack.c.l.bf16 %v63
    %v65 = vlaneseq
    %v66 = vand.u32 %v65, 127
    %v67 = vld [vmem:[%s1] sm:$0x1]
    %v68 = vld [vmem:[%s0] sm:$0x1]
    %v69 = vpack.c.bf16 %v68, %v68
    %v76 = vunpack.c.l.b16 %v31
    %v77 = vunpack.c.l.b16 %v32
    %v78 = vunpack.c.l.b16 %v33
    %v79 = vunpack.c.l.b16 %v34
    %v80 = vunpack.c.l.b16 %v35
    %v81 = vunpack.c.l.b16 %v36
    %v82 = vpack.c.b16 %v77, %v76
    %v83 = vpack.c.b16 %v79, %v78
    %v84 = vpack.c.b16 %v81, %v80
    %vm88 = vcmask 392192
    %v90 = vsel %vm88, %v69, 0
    %92 = vmatprep.subr.bf16.mxu0 0
    %93 = vmatpush1.bf16.msra.mxu0 %v82
    %94 = vmatprep.subr.bf16.mxu0 0
    %95 = vmatpush1.bf16.msra.mxu0 %v83
    %96 = vmatprep.subr.bf16.mxu0 0
    %97 = vmatpush1.bf16.msra.mxu0 %v84
    %98 = vmatprep.subr.bf16.mxu0 0
    %99 = vmatpush1.bf16.msra.mxu0 0
    %100 = vmatprep.subr.bf16.mxu0 0
    %101 = vmatpush1.bf16.msra.mxu0 0
    %102 = vmatprep.subr.bf16.mxu0 0
    %103 = vmatpush1.bf16.msra.mxu0 0
    %104 = vmatprep.subr.bf16.mxu0 0
    %105 = vmatpush1.bf16.msra.mxu0 0
    %106 = vmatprep.subr.bf16.mxu0 0
    %107 = vmatpush1.bf16.msra.mxu0 0
    %108 = vmatprep.subr.bf16.mxu0 0
    %109 = vmatpush1.bf16.msra.mxu0 0
    %110 = vmatprep.subr.bf16.mxu0 0
    %111 = vmatpush1.bf16.msra.mxu0 0
    %112 = vmatprep.subr.bf16.mxu0 0
    %113 = vmatpush1.bf16.msra.mxu0 0
    %114 = vmatprep.subr.bf16.mxu0 0
    %115 = vmatpush1.bf16.msra.mxu0 0
    %116 = vmatprep.subr.bf16.mxu0 0
    %117 = vmatpush1.bf16.msra.mxu0 0
    %118 = vmatprep.subr.bf16.mxu0 0
    %119 = vmatpush1.bf16.msra.mxu0 0
    %120 = vmatprep.subr.bf16.mxu0 0
    %121 = vmatpush1.bf16.msra.mxu0 0
    %122 = vmatprep.subr.bf16.mxu0 0
    %123 = vmatpush1.bf16.msra.mxu0 0
    %124 = vmatprep.mubr.bf16.mxu0 0
    %125 = vmatmul.mubr.bf16.gmra.mrb[0].mxu0 %v90
    %v126 = vpop.f32.mrb[0].mxu0
    %v127 = vadd.f32 %v64, %v126
    %v128 = vpop.f32.mrb[0].mxu0
    %v129 = vpop.f32.mrb[0].mxu0
    %v130 = vpop.f32.mrb[0].mxu0
    %131 = vdwg.mxu0
    %v132 = vmax.f32 %v127, 0.0
    %v133 = vpack.c.bf16 %v132, %v132
    %v136 = vunpack.c.l.b16 %v37
    %v137 = vunpack.c.l.b16 %v38
    %v138 = vpack.c.b16 %v137, %v136
    %v141 = vrot.slane %v64, 1
    %vm143 = vcmask 130048
    %v145 = vsel %vm143, %v133, 0
    %147 = vmatprep.subr.bf16.mxu0 0
    %148 = vmatpush1.bf16.msra.mxu0 %v138
    %149 = vmatprep.subr.bf16.mxu0 0
    %150 = vmatpush1.bf16.msra.mxu0 0
    %151 = vmatprep.subr.bf16.mxu0 0
    %152 = vmatpush1.bf16.msra.mxu0 0
    %153 = vmatprep.subr.bf16.mxu0 0
    %154 = vmatpush1.bf16.msra.mxu0 0
    %155 = vmatprep.subr.bf16.mxu0 0
    %156 = vmatpush1.bf16.msra.mxu0 0
    %157 = vmatprep.subr.bf16.mxu0 0
    %158 = vmatpush1.bf16.msra.mxu0 0
    %159 = vmatprep.subr.bf16.mxu0 0
    %160 = vmatpush1.bf16.msra.mxu0 0
    %161 = vmatprep.subr.bf16.mxu0 0
    %162 = vmatpush1.bf16.msra.mxu0 0
    %163 = vmatprep.subr.bf16.mxu0 0
    %164 = vmatpush1.bf16.msra.mxu0 0
    %165 = vmatprep.subr.bf16.mxu0 0
    %166 = vmatpush1.bf16.msra.mxu0 0
    %167 = vmatprep.subr.bf16.mxu0 0
    %168 = vmatpush1.bf16.msra.mxu0 0
    %169 = vmatprep.subr.bf16.mxu0 0
    %170 = vmatpush1.bf16.msra.mxu0 0
    %171 = vmatprep.subr.bf16.mxu0 0
    %172 = vmatpush1.bf16.msra.mxu0 0
    %173 = vmatprep.subr.bf16.mxu0 0
    %174 = vmatpush1.bf16.msra.mxu0 0
    %175 = vmatprep.subr.bf16.mxu0 0
    %176 = vmatpush1.bf16.msra.mxu0 0
    %177 = vmatprep.subr.bf16.mxu0 0
    %178 = vmatpush1.bf16.msra.mxu0 0
    %179 = vmatprep.mubr.bf16.mxu0 0
    %180 = vmatmul.mubr.bf16.gmra.mrb[0].mxu0 %v145
    %v181 = vpop.f32.mrb[0].mxu0
    %v182 = vadd.f32 %v141, %v181
    %v183 = vpop.f32.mrb[0].mxu0
    %v184 = vpop.f32.mrb[0].mxu0
    %v185 = vpop.f32.mrb[0].mxu0
    %186 = vdwg.mxu0
    %v187 = vpack.c.bf16 %v67, %v67
    %v192 = vunpack.c.l.b16 %v39
    %v193 = vunpack.c.l.b16 %v40
    %v194 = vunpack.c.l.b16 %v41
    %v195 = vunpack.c.l.b16 %v42
    %v196 = vpack.c.b16 %v193, %v192
    %v197 = vpack.c.b16 %v195, %v194
    %v200 = vrot.slane %v64, 2
    %vm202 = vcmask 261120
    %v204 = vsel %vm202, %v187, 0
    %206 = vmatprep.subr.bf16.mxu0 0
    %207 = vmatpush1.bf16.msra.mxu0 %v196
    %208 = vmatprep.subr.bf16.mxu0 0
    %209 = vmatpush1.bf16.msra.mxu0 %v197
    %210 = vmatprep.subr.bf16.mxu0 0
    %211 = vmatpush1.bf16.msra.mxu0 0
    %212 = vmatprep.subr.bf16.mxu0 0
    %213 = vmatpush1.bf16.msra.mxu0 0
    %214 = vmatprep.subr.bf16.mxu0 0
    %215 = vmatpush1.bf16.msra.mxu0 0
    %216 = vmatprep.subr.bf16.mxu0 0
    %217 = vmatpush1.bf16.msra.mxu0 0
    %218 = vmatprep.subr.bf16.mxu0 0
    %219 = vmatpush1.bf16.msra.mxu0 0
    %220 = vmatprep.subr.bf16.mxu0 0
    %221 = vmatpush1.bf16.msra.mxu0 0
    %222 = vmatprep.subr.bf16.mxu0 0
    %223 = vmatpush1.bf16.msra.mxu0 0
    %224 = vmatprep.subr.bf16.mxu0 0
    %225 = vmatpush1.bf16.msra.mxu0 0
    %226 = vmatprep.subr.bf16.mxu0 0
    %227 = vmatpush1.bf16.msra.mxu0 0
    %228 = vmatprep.subr.bf16.mxu0 0
    %229 = vmatpush1.bf16.msra.mxu0 0
    %230 = vmatprep.subr.bf16.mxu0 0
    %231 = vmatpush1.bf16.msra.mxu0 0
    %232 = vmatprep.subr.bf16.mxu0 0
    %233 = vmatpush1.bf16.msra.mxu0 0
    %234 = vmatprep.subr.bf16.mxu0 0
    %235 = vmatpush1.bf16.msra.mxu0 0
    %236 = vmatprep.subr.bf16.mxu0 0
    %237 = vmatpush1.bf16.msra.mxu0 0
    %238 = vmatprep.mubr.bf16.mxu0 0
    %239 = vmatmul.mubr.bf16.gmra.mrb[0].mxu0 %v204
    %v240 = vpop.f32.mrb[0].mxu0
    %v241 = vadd.f32 %v200, %v240
    %v242 = vpop.f32.mrb[0].mxu0
    %v243 = vpop.f32.mrb[0].mxu0
    %v244 = vpop.f32.mrb[0].mxu0
    %245 = vdwg.mxu0
    %v246 = vadd.f32 %v182, %v241
    %v247 = vxor.u32 %v246, 2147483648
    %v248 = vmul.f32 %v247, 1.442695
    %v249 = vpow.pop %v248
    %v250 = vadd.f32 %v249, 1.0
    %v251 = vrcp.pop %v250
    %v252 = vmul.f32 1.0, %v251
    %254 = vrot.lane.b32.xlu0 %v241, 64
    %v255 = vpop.permute.xlu0 %254
    %v257 = vmul.f32 %v252, %v255
    %259 = vrot.lane.b32.xlu0 %v257, 64
    %v260 = vpop.permute.xlu0 %259
    %v262 = vadd.f32 %v182, %v260
    %v263 = vtanh.pop %v262
    %v264 = vsub.f32 1.0, %v252
    %266 = vrot.lane.b32.xlu0 %v263, 96
    %v267 = vpop.permute.xlu0 %266
    %v269 = vmul.f32 %v264, %v267
    %v271 = vlaneseq
    %v272 = vshrl.u32 %v271, 7
    %v273 = vsub.s32 0, %v272
    %v274 = vrot.slane %v67, %v273
    %275 = vrot.lane.b32.xlu0 %v274, 32
    %v276 = vpop.permute.xlu0 %275
    %v278 = vmul.f32 %v252, %v276
    %v279 = vadd.f32 %v269, %v278
    %v280 = vpack.c.bf16 %v279, %v279
    %282 = vrot.lane.b32.xlu0 %v280, 96
    %v283 = vpop.permute.xlu0 %282
    %v288 = vunpack.c.l.b16 %v43
    %v289 = vunpack.c.l.b16 %v44
    %v290 = vunpack.c.l.b16 %v45
    %v291 = vunpack.c.l.b16 %v46
    %v292 = vpack.c.b16 %v289, %v288
    %v293 = vpack.c.b16 %v291, %v290
    %v296 = vrot.slane %v64, 3
    %v299 = vsel %vm202, %v283, 0
    %301 = vmatprep.subr.bf16.mxu0 0
    %302 = vmatpush1.bf16.msra.mxu0 %v292
    %303 = vmatprep.subr.bf16.mxu0 0
    %304 = vmatpush1.bf16.msra.mxu0 %v293
    %305 = vmatprep.subr.bf16.mxu0 0
    %306 = vmatpush1.bf16.msra.mxu0 0
    %307 = vmatprep.subr.bf16.mxu0 0
    %308 = vmatpush1.bf16.msra.mxu0 0
    %309 = vmatprep.subr.bf16.mxu0 0
    %310 = vmatpush1.bf16.msra.mxu0 0
    %311 = vmatprep.subr.bf16.mxu0 0
    %312 = vmatpush1.bf16.msra.mxu0 0
    %313 = vmatprep.subr.bf16.mxu0 0
    %314 = vmatpush1.bf16.msra.mxu0 0
    %315 = vmatprep.subr.bf16.mxu0 0
    %316 = vmatpush1.bf16.msra.mxu0 0
    %317 = vmatprep.subr.bf16.mxu0 0
    %318 = vmatpush1.bf16.msra.mxu0 0
    %319 = vmatprep.subr.bf16.mxu0 0
    %320 = vmatpush1.bf16.msra.mxu0 0
    %321 = vmatprep.subr.bf16.mxu0 0
    %322 = vmatpush1.bf16.msra.mxu0 0
    %323 = vmatprep.subr.bf16.mxu0 0
    %324 = vmatpush1.bf16.msra.mxu0 0
    %325 = vmatprep.subr.bf16.mxu0 0
    %326 = vmatpush1.bf16.msra.mxu0 0
    %327 = vmatprep.subr.bf16.mxu0 0
    %328 = vmatpush1.bf16.msra.mxu0 0
    %329 = vmatprep.subr.bf16.mxu0 0
    %330 = vmatpush1.bf16.msra.mxu0 0
    %331 = vmatprep.subr.bf16.mxu0 0
    %332 = vmatpush1.bf16.msra.mxu0 0
    %333 = vmatprep.mubr.bf16.mxu0 0
    %334 = vmatmul.mubr.bf16.gmra.mrb[0].mxu0 %v299
    %v335 = vpop.f32.mrb[0].mxu0
    %v336 = vadd.f32 %v296, %v335
    %v337 = vpop.f32.mrb[0].mxu0
    %v338 = vpop.f32.mrb[0].mxu0
    %v339 = vpop.f32.mrb[0].mxu0
    %340 = vdwg.mxu0
    %v341 = vmax.f32 %v336, 0.0
    %v342 = vpack.c.bf16 %v341, %v341
    %v359 = vunpack.c.l.b16 %v47
    %v360 = vunpack.c.l.b16 %v48
    %v361 = vunpack.c.l.b16 %v49
    %v362 = vunpack.c.l.b16 %v50
    %v363 = vunpack.c.l.b16 %v51
    %v364 = vunpack.c.l.b16 %v52
    %v365 = vunpack.c.l.b16 %v53
    %v366 = vunpack.c.l.b16 %v54
    %v367 = vunpack.c.l.b16 %v55
    %v368 = vunpack.c.l.b16 %v56
    %v369 = vunpack.c.l.b16 %v57
    %v370 = vunpack.c.l.b16 %v58
    %v371 = vunpack.c.l.b16 %v59
    %v372 = vunpack.c.l.b16 %v60
    %v373 = vunpack.c.l.b16 %v61
    %v374 = vunpack.c.l.b16 %v62
    %v375 = vpack.c.b16 %v360, %v359
    %v376 = vpack.c.b16 %v362, %v361
    %v377 = vpack.c.b16 %v364, %v363
    %v378 = vpack.c.b16 %v366, %v365
    %v379 = vpack.c.b16 %v368, %v367
    %v380 = vpack.c.b16 %v370, %v369
    %v381 = vpack.c.b16 %v372, %v371
    %v382 = vpack.c.b16 %v374, %v373
    %v391 = vrot.slane %v64, 4
    %393 = vmatprep.subr.bf16.mxu0 0
    %394 = vmatpush1.bf16.msra.mxu0 %v375
    %395 = vmatprep.subr.bf16.mxu0 0
    %396 = vmatpush1.bf16.msra.mxu0 %v376
    %397 = vmatprep.subr.bf16.mxu0 0
    %398 = vmatpush1.bf16.msra.mxu0 %v377
    %399 = vmatprep.subr.bf16.mxu0 0
    %400 = vmatpush1.bf16.msra.mxu0 %v378
    %401 = vmatprep.subr.bf16.mxu0 0
    %402 = vmatpush1.bf16.msra.mxu0 %v379
    %403 = vmatprep.subr.bf16.mxu0 0
    %404 = vmatpush1.bf16.msra.mxu0 %v380
    %405 = vmatprep.subr.bf16.mxu0 0
    %406 = vmatpush1.bf16.msra.mxu0 %v381
    %407 = vmatprep.subr.bf16.mxu0 0
    %408 = vmatpush1.bf16.msra.mxu0 %v382
    %409 = vmatprep.subr.bf16.mxu0 0
    %410 = vmatpush1.bf16.msra.mxu0 0
    %411 = vmatprep.subr.bf16.mxu0 0
    %412 = vmatpush1.bf16.msra.mxu0 0
    %413 = vmatprep.subr.bf16.mxu0 0
    %414 = vmatpush1.bf16.msra.mxu0 0
    %415 = vmatprep.subr.bf16.mxu0 0
    %416 = vmatpush1.bf16.msra.mxu0 0
    %417 = vmatprep.subr.bf16.mxu0 0
    %418 = vmatpush1.bf16.msra.mxu0 0
    %419 = vmatprep.subr.bf16.mxu0 0
    %420 = vmatpush1.bf16.msra.mxu0 0
    %421 = vmatprep.subr.bf16.mxu0 0
    %422 = vmatpush1.bf16.msra.mxu0 0
    %423 = vmatprep.subr.bf16.mxu0 0
    %424 = vmatpush1.bf16.msra.mxu0 0
    %425 = vmatprep.mubr.bf16.mxu0 0
    %426 = vmatmul.mubr.bf16.gmra.mrb[0].mxu0 %v342
    %v427 = vpop.f32.mrb[0].mxu0
    %v428 = vadd.f32 %v391, %v427
    %v429 = vpop.f32.mrb[0].mxu0
    %v430 = vpop.f32.mrb[0].mxu0
    %v431 = vpop.f32.mrb[0].mxu0
    %432 = vdwg.mxu0
    %vm433 = vcmp.lt.s32.totalorder %v66, 16
    %v434 = vsel %vm433, %v428, -1e+30
    %vm435 = vcmask 1040384
    %v436 = vsel %vm435, %v434, -inf
    %437 = vmax.xlane.f32.xlu0 %v436
    %v438 = vpop.xlane.xlu0 %437
    %v439 = vsub.f32 %v434, %v438
    %v440 = vmul.f32 %v439, 1.442695
    %v441 = vpow.pop %v440
    %v442 = vsel %vm435, %v441, 0.0
    %443 = vadd.xlane.f32.xlu0 %v442
    %v444 = vpop.xlane.xlu0 %443
    %v445 = vlog2.pop %v444
    %v446 = vmul.f32 %v445, 0.6931472
    %v447 = vadd.f32 %v438, %v446
    %v448 = vsub.f32 %v434, %v447
    %449 = vst [vmem:[%s3] sm:$0x1] %v448
    %451 = vrot.lane.b32.xlu0 %v279, 96
    %v452 = vpop.permute.xlu0 %451
    %vm454 = vcmask 253952
    %455 = vst.msk [vmem:[%s4] sm:$0x1] %vm454, %v452
    // Predicated region
    $region18: #{simple_attn_decoder_forward.1} parent=1 // pred_check
      _
    $region19: #{simple_attn_decoder_forward.1} parent=1 // pred_check_branch
      %457 = sbr.rel (0) target = $region21
    $region20: #{simple_attn_decoder_forward.1} parent=1 // pred_region
      _
    $region21: #{simple_attn_decoder_forward.1} parent=1 // pred_fallthru
      _
    // Predicated region
    $region22: #{simple_attn_decoder_forward.1} parent=1 // pred_check
      _
    $region23: #{simple_attn_decoder_forward.1} parent=1 // pred_check_branch
      %459 = sbr.rel (0) target = $region25
    $region24: #{simple_attn_decoder_forward.1} parent=1 // pred_region
      _
    $region25: #{simple_attn_decoder_forward.1} parent=1 // pred_fallthru
      _
    // Predicated region
    $region26: #{simple_attn_decoder_forward.1} parent=1 // pred_check
      _
    $region27: #{simple_attn_decoder_forward.1} parent=1 // pred_check_branch
      %461 = sbr.rel (0) target = $region29
    $region28: #{simple_attn_decoder_forward.1} parent=1 // pred_region
      _
    $region29: #{simple_attn_decoder_forward.1} parent=1 // pred_fallthru
      _
    // Predicated region
    $region30: #{simple_attn_decoder_forward.1} parent=1 // pred_check
      _
    $region31: #{simple_attn_decoder_forward.1} parent=1 // pred_check_branch
      %463 = sbr.rel (0) target = $region33
    $region32: #{simple_attn_decoder_forward.1} parent=1 // pred_region
      _
    $region33: #{simple_attn_decoder_forward.1} parent=1 // pred_fallthru
      _
    %464 = vsyncpa [#allocation3], 1

</llo_original>
